<compile_context>
chip_gen: v7x
topology: tpu7x:2x2x1
jax: 0.10.0
libtpu: 0.0.40
codegen_flags: <defaults>
</compile_context>

<pallas_src>
import functools
import math

import jax
import jax.numpy as jnp
import numpy as np
from jax.experimental import pallas as pl
from jax.experimental.pallas import tpu as pltpu


def _pe_kernel(phase_ref, div_ref, off_ref, out_ref, *, d_model):
    # phase_ref: (TB, TL, G)         folded phase; lane group g holds seq position l*G+g
    # div_ref:   (1, 1, G*d_model)   div_term repeated pairwise, tiled G times
    # off_ref:   (1, 1, G*d_model)   [0, pi/2, 0, pi/2, ...] -> sin(x+pi/2) == cos(x)
    # out_ref:   (TB, TL, G*d_model)
    phase = jnp.repeat(phase_ref[...], d_model, axis=-1)      # lane expand (XLU)
    arg = phase * div_ref[...] + off_ref[...]
    out_ref[...] = jnp.sin(arg).astype(out_ref.dtype)


def positional_encoding_pallas(t_s, d_model, max_len=5000, out_dtype=jnp.float32):
    """Equivalent of PositionalEncoding.forward(t_s, device) -> (B, L, d_model)."""
    del max_len  # carried by the PyTorch module but unused in forward
    assert d_model % 2 == 0, "d_model must be even (sin/cos interleave)"
    B, L = t_s.shape
    t_s = t_s.astype(jnp.float32)

    # ---- O(B*L) scalar prefix work, kept in XLA (overlaps with the kernel) ---------
    # NOTE: division by the diff-sum gives NaN/Inf if all diffs are <= 0 (or L == 1),
    # matching the PyTorch module's behavior.
    position = jnp.arange(L, dtype=jnp.float32)
    t_diff = jnp.diff(t_s, axis=1)
    t_diff = jnp.where(t_diff < 0.0, 0.0, t_diff)
    t_inter = t_diff / jnp.sum(t_diff, axis=1, keepdims=True)
    t_inter = jnp.concatenate([jnp.zeros((B, 1), jnp.float32), t_inter], axis=1)
    phase = position[None, :] + jnp.cumsum(t_inter, axis=1)          # (B, L)

    # ---- lane fold: pack G consecutive positions into the 128-lane axis ------------
    if d_model % 128 != 0 and 128 % d_model == 0 and L % (128 // d_model) == 0:
        G = 128 // d_model
    else:
        G = 1                                # already lane-dense, or shapes don't fold
    Lf = L // G
    D_lane = G * d_model
    phase_f = phase.reshape(B, Lf, G)        # contiguous reshape, free

    # ---- grid-invariant lane vectors ------------------------------------------------
    div_term = jnp.exp(
        jnp.arange(0, d_model, 2, dtype=jnp.float32) * (-(math.log(10000.0) / d_model))
    )                                                                 # (d_model//2,)
    div_full = jnp.tile(jnp.repeat(div_term, 2), G).reshape(1, 1, D_lane)
    offset = jnp.tile(
        jnp.array([0.0, math.pi / 2.0], dtype=jnp.float32), D_lane // 2
    ).reshape(1, 1, D_lane)                                           # odd lanes -> cos

    # ---- tiling: ~4 MiB of output per grid step (safe for v7x's 64 MiB VMEM) --------
    itemsize = jnp.dtype(out_dtype).itemsize
    budget = 4 * 1024 * 1024
    row_bytes = Lf * D_lane * itemsize

    TB = int(max(1, min(B, budget // max(row_bytes, 1))))
    if B >= 2:
        TB = min(TB, pl.cdiv(B, 2))          # >=2 batch steps -> both v7x TCs get work

    if row_bytes <= budget:
        TL = Lf
    else:
        TB = 1
        TL = int(min(Lf, max(8, (budget // max(D_lane * itemsize, 1)) // 8 * 8)))
    if B == 1 and TL == Lf and Lf >= 16:
        TL = max(8, (Lf // 2) // 8 * 8)      # give v7x's second core work when B == 1

    grid = (pl.cdiv(B, TB), pl.cdiv(Lf, TL))

    cost = pl.CostEstimate(
        flops=2 * B * L * d_model,
        transcendentals=B * L * d_model,
        bytes_accessed=B * L * d_model * itemsize + 4 * B * L + 2 * 4 * D_lane,
    )

    out_folded = pl.pallas_call(
        functools.partial(_pe_kernel, d_model=d_model),
        out_shape=jax.ShapeDtypeStruct((B, Lf, D_lane), out_dtype),
        grid=grid,
        in_specs=[
            pl.BlockSpec((TB, TL, G), lambda b, l: (b, l, 0)),         # folded phase
            pl.BlockSpec((1, 1, D_lane), lambda b, l: (0, 0, 0)),      # shared div_term
            pl.BlockSpec((1, 1, D_lane), lambda b, l: (0, 0, 0)),      # shared sin/cos offset
        ],
        out_specs=pl.BlockSpec((TB, TL, D_lane), lambda b, l: (b, l, 0)),
        compiler_params=pltpu.CompilerParams(
            dimension_semantics=("parallel", "parallel"),
            vmem_limit_bytes=32 * 1024 * 1024,
        ),
        cost_estimate=cost,
    )(phase_f, div_full, offset)

    return out_folded.reshape(B, L, d_model)  # contiguous un-fold, free


def positional_encoding_reference(t_s, d_model):
    # Pure-JAX replica of the PyTorch forward, for verification.
    B, L = t_s.shape
    position = jnp.arange(L, dtype=jnp.float32)
    t_diff = jnp.diff(t_s, axis=1)
    t_diff = jnp.where(t_diff < 0, 0.0, t_diff)
    t_inter = t_diff / jnp.sum(t_diff, axis=1, keepdims=True)
    t_inter = jnp.concatenate([jnp.zeros((B, 1), jnp.float32), t_inter], axis=1)
    t_inter_p = (position + jnp.cumsum(t_inter, axis=1))[:, :, None]
    div_term = jnp.exp(
        jnp.arange(0, d_model, 2, dtype=jnp.float32) * (-(math.log(10000.0) / d_model))
    )
    arg = t_inter_p * div_term
    pe = jnp.zeros((B, L, d_model), jnp.float32)
    pe = pe.at[:, :, 0::2].set(jnp.sin(arg))
    pe = pe.at[:, :, 1::2].set(jnp.cos(arg))
    return pe


if __name__ == "__main__":
    B, L, d_model = 2, 8, 32

    key = jax.random.PRNGKey(0)
    # Deterministic "timestamps"; unsorted so the negative-diff masking is exercised.
    t_s = jax.random.uniform(key, (B, L), dtype=jnp.float32) * 10.0

    pe = jax.block_until_ready(positional_encoding_pallas(t_s, d_model))
    ref = jax.block_until_ready(positional_encoding_reference(t_s, d_model))
    np.testing.assert_allclose(np.asarray(pe), np.asarray(ref), rtol=1e-4, atol=1e-4)

    print("KERNEL_OK")
</pallas_src>

<mosaic_0001>
module attributes {stable_mosaic.version = 11 : i64} {
  func.func @_pe_kernel(%arg0: i32, %arg1: i32, %arg2: memref<1x2x4xf32, #tpu.memory_space<vmem>>, %arg3: memref<1x1x128xf32, #tpu.memory_space<vmem>>, %arg4: memref<1x1x128xf32, #tpu.memory_space<vmem>>, %arg5: memref<1x2x128xf32, #tpu.memory_space<vmem>>) attributes {dimension_semantics = [#tpu.dimension_semantics<parallel>, #tpu.dimension_semantics<parallel>], iteration_bounds = array<i64: 2, 1>, scalar_prefetch = 0 : i64, scratch_operands = 0 : i64, tpu.core_type = #tpu.core_type<tc>, window_params = [{transform_indices = @transform_0, window_bounds = array<i64: 1, 2, 4>}, {pipeline_mode = #tpu.pipeline_mode<synchronous>, transform_indices = @transform_1, window_bounds = array<i64: 1, 1, 128>}, {pipeline_mode = #tpu.pipeline_mode<synchronous>, transform_indices = @transform_2, window_bounds = array<i64: 1, 1, 128>}, {transform_indices = @transform_3, window_bounds = array<i64: 1, 2, 128>}]} {
    %c0 = arith.constant 0 : index
    %c0_0 = arith.constant 0 : index
    %c0_1 = arith.constant 0 : index
    %0 = vector.load %arg2[%c0, %c0_0, %c0_1] : memref<1x2x4xf32, #tpu.memory_space<vmem>>, vector<1x2x4xf32>
    %1 = vector.shape_cast %0 : vector<1x2x4xf32> to vector<1x2x4x1xf32>
    %2 = vector.broadcast %1 : vector<1x2x4x1xf32> to vector<1x2x4x32xf32>
    %3 = vector.shape_cast %2 : vector<1x2x4x32xf32> to vector<1x2x128xf32>
    %c0_2 = arith.constant 0 : index
    %c0_3 = arith.constant 0 : index
    %c0_4 = arith.constant 0 : index
    %4 = vector.load %arg3[%c0_2, %c0_3, %c0_4] : memref<1x1x128xf32, #tpu.memory_space<vmem>>, vector<1x1x128xf32>
    %5 = vector.broadcast %4 : vector<1x1x128xf32> to vector<1x2x128xf32>
    %6 = arith.mulf %3, %5 : vector<1x2x128xf32>
    %c0_5 = arith.constant 0 : index
    %c0_6 = arith.constant 0 : index
    %c0_7 = arith.constant 0 : index
    %7 = vector.load %arg4[%c0_5, %c0_6, %c0_7] : memref<1x1x128xf32, #tpu.memory_space<vmem>>, vector<1x1x128xf32>
    %8 = vector.broadcast %7 : vector<1x1x128xf32> to vector<1x2x128xf32>
    %9 = arith.addf %6, %8 : vector<1x2x128xf32>
    %10 = math.sin %9 : vector<1x2x128xf32>
    %c0_8 = arith.constant 0 : index
    %c0_9 = arith.constant 0 : index
    %c0_10 = arith.constant 0 : index
    %11 = vector.load %arg5[%c0_8, %c0_9, %c0_10] : memref<1x2x128xf32, #tpu.memory_space<vmem>>, vector<1x2x128xf32>
    tpu.vector_store %arg5[%c0_8, %c0_9, %c0_10], %10 {strides = array<i32>} : memref<1x2x128xf32, #tpu.memory_space<vmem>>, vector<1x2x128xf32>,
    return
  }
  func.func @transform_0(%arg0: i32, %arg1: i32) -> (i32, i32, i32) {
    %c0_i32 = arith.constant 0 : i32
    %c0_i32_0 = arith.constant 0 : i32
    return %arg0, %arg1, %c0_i32 : i32, i32, i32
  }
  func.func @transform_1(%arg0: i32, %arg1: i32) -> (i32, i32, i32) {
    %c0_i32 = arith.constant 0 : i32
    %c0_i32_0 = arith.constant 0 : i32
    %c0_i32_1 = arith.constant 0 : i32
    %c0_i32_2 = arith.constant 0 : i32
    return %c0_i32, %c0_i32_0, %c0_i32_1 : i32, i32, i32
  }
  func.func @transform_2(%arg0: i32, %arg1: i32) -> (i32, i32, i32) {
    %c0_i32 = arith.constant 0 : i32
    %c0_i32_0 = arith.constant 0 : i32
    %c0_i32_1 = arith.constant 0 : i32
    %c0_i32_2 = arith.constant 0 : i32
    return %c0_i32, %c0_i32_0, %c0_i32_1 : i32, i32, i32
  }
  func.func @transform_3(%arg0: i32, %arg1: i32) -> (i32, i32, i32) {
    %c0_i32 = arith.constant 0 : i32
    %c0_i32_0 = arith.constant 0 : i32
    return %arg0, %arg1, %c0_i32 : i32, i32, i32
  }
}

</mosaic_0001>

<llo_original>
// kernel: tpu_custom_call.1
$region0: #{tpu_custom_call.1}
  #allocation0 [shape = 'u32[]', space=smem, size = 0x4, offset = 0x4, fixed_abs, tag = 'smem constant byte address 0x4 - core index']
  #allocation1 [shape = 'u32[144,128]{1,0:T(1,128)}', space=vmem, size = 0x12000, scoped, tag = 'internal scratch']
  %s0 = inlined_call_operand.hbm [shape: f32[2,2,4], index: 0, kind: input, shape index: {}]
  %s1 = inlined_call_operand.vmem [shape: f32[1,1,128], index: 1, kind: input, shape index: {}]
  %s2 = inlined_call_operand.vmem [shape: f32[1,1,128], index: 2, kind: input, shape index: {}]
  %s3 = inlined_call_operand.hbm [shape: f32[2,2,128], index: 3, kind: output, shape index: {}]
  %s4 = sld [smem:[#allocation0]]
  $region49: #{tpu_custom_call.1} parent=0
    _
  %s6 = ssub.s32 1, %s4
  %s7 = scalar_select 0, %s6, %s4
  $region1: #{tpu_custom_call.1} parent=0
    #allocation2 [shape = 'u8[2048]{0}', space=vmem, size = 0x800, scoped, tag = 'input window, operand 0']
    #allocation3 [shape = 's32[2]{0}', space=sflag, size = 0x8, scoped, tag = 'scoped memory for tpu_custom_call.1']
    #allocation4 [shape = 's32[2]{0}', space=sflag, size = 0x8, scoped, tag = 'scoped memory for tpu_custom_call.1']
    #allocation5 [shape = 'u8[2048]{0}', space=vmem, size = 0x800, scoped, tag = 'output window, operand 0']
    %8 = vsyncpa [#allocation3], 0
    %s9 = scalar_lea.sflag [#allocation3], 1
    %10 = vsyncpa %s9, 0
    %11 = vsyncpa [#allocation4], 0
    %s12 = scalar_lea.sflag [#allocation4], 1
    %13 = vsyncpa %s12, 0
    loop: start=0, step=1, limit=4
    $region2: #{tpu_custom_call.1} parent=1 // loop_pre_header
      _
    $region3: #{tpu_custom_call.1} parent=1 // loop_header
      %s15 = sphi 0, %s19
      %p16 = scmp.ge.s32.totalorder %s15, 4
      %s22 = sphi 0, %s34
      %s23 = sphi 0, %s30
      %s24 = sphi 0, %s22
      %s25 = sphi 0, %s23
      %s26 = sphi 0, %s24
      %s27 = sphi 0, %s25
      %s39 = sphi 0, %s41
      %s42 = sphi 0, %s39
      %s43 = sphi 0, %s42
      %s59 = sphi 0, %s43
      %s63 = sphi 0, %s63
      %s65 = sphi 0, %s63
      %s66 = sphi 0, %s65
      %s80 = sphi 0, %s66
      %s84 = sphi 0, %s84
      %s86 = sphi 0, %s84
      %s87 = sphi 0, %s86
      %s101 = sphi 0, %s87
      %s109 = sphi 0, %s111
      %s112 = sphi 0, %s109
      %s113 = sphi 0, %s112
      %s129 = sphi 0, %s113
    $region4: #{tpu_custom_call.1} parent=1 // loop_header_branch
      %18 = sbr.rel (%p16) target = $region8
    $region5: #{tpu_custom_call.1} parent=1 // loop_body
      %s20 = ssub.s32 %s15, 1
      %s21 = ssub.s32 %s15, 2
      %s28 = sadd.s32 1, %s23
      %p29 = scmp.ge.s32.totalorder %s28, 1
      %s30 = scalar_select %p29, 0, %s28
      %s31 = sadd.s32 1, %s22
      %s32 = scalar_select %p29, %s31, %s22
      %p33 = scmp.ge.s32.totalorder %s32, 2
      %s34 = scalar_select %p33, 0, %s32
      %s35 = ssub.s32 %s22, %s34
      %s36 = ssub.s32 %s23, %s30
      %s37 = sor.u32 %s35, %s36
      %p38 = scmp.eq.s32.totalorder %s37, 0
      %s40 = sadd.s32 %s39, 1
      %s41 = scalar_select %p38, %s39, %s40
      %p44 = pneg %p38
      %p45 = scmp.eq.s32.totalorder %s15, 1
      %p46 = por %p44, %p45
      %p47 = scmp.ne.s32.totalorder %s39, %s42
      %p48 = scmp.eq.s32.totalorder %s15, 0
      %p49 = por %p47, %p48
      %p50 = scmp.ne.s32.totalorder %s39, %s42
      %p51 = scmp.eq.s32.totalorder %s20, 1
      %p52 = por %p50, %p51
      %p53 = scmp.ne.s32.totalorder %s42, %s43
      %p54 = scmp.eq.s32.totalorder %s20, 0
      %p55 = por %p53, %p54
      %p56 = scmp.ne.s32.totalorder %s42, %s43
      %p57 = scmp.eq.s32.totalorder %s21, 1
      %p58 = por %p56, %p57
      %p60 = scmp.ne.s32.totalorder %s43, %s59
      %p61 = scmp.eq.s32.totalorder %s21, 0
      %p62 = por %p60, %p61
      %s64 = sadd.s32 %s63, 1
      %p67 = scmp.eq.s32.totalorder %s15, 1
      %p68 = scmp.ne.s32.totalorder %s63, %s65
      %p69 = scmp.eq.s32.totalorder %s15, 0
      %p70 = por %p68, %p69
      %p71 = scmp.ne.s32.totalorder %s63, %s65
      %p72 = scmp.eq.s32.totalorder %s20, 1
      %p73 = por %p71, %p72
      %p74 = scmp.ne.s32.totalorder %s65, %s66
      %p75 = scmp.eq.s32.totalorder %s20, 0
      %p76 = por %p74, %p75
      %p77 = scmp.ne.s32.totalorder %s65, %s66
      %p78 = scmp.eq.s32.totalorder %s21, 1
      %p79 = por %p77, %p78
      %p81 = scmp.ne.s32.totalorder %s66, %s80
      %p82 = scmp.eq.s32.totalorder %s21, 0
      %p83 = por %p81, %p82
      %s85 = sadd.s32 %s84, 1
      %p88 = scmp.eq.s32.totalorder %s15, 1
      %p89 = scmp.ne.s32.totalorder %s84, %s86
      %p90 = scmp.eq.s32.totalorder %s15, 0
      %p91 = por %p89, %p90
      %p92 = scmp.ne.s32.totalorder %s84, %s86
      %p93 = scmp.eq.s32.totalorder %s20, 1
      %p94 = por %p92, %p93
      %p95 = scmp.ne.s32.totalorder %s86, %s87
      %p96 = scmp.eq.s32.totalorder %s20, 0
      %p97 = por %p95, %p96
      %p98 = scmp.ne.s32.totalorder %s86, %s87
      %p99 = scmp.eq.s32.totalorder %s21, 1
      %p100 = por %p98, %p99
      %p102 = scmp.ne.s32.totalorder %s87, %s101
      %p103 = scmp.eq.s32.totalorder %s21, 0
      %p104 = por %p102, %p103
      %s105 = ssub.s32 %s22, %s34
      %s106 = ssub.s32 %s23, %s30
      %s107 = sor.u32 %s105, %s106
      %p108 = scmp.eq.s32.totalorder %s107, 0
      %s110 = sadd.s32 %s109, 1
      %s111 = scalar_select %p108, %s109, %s110
      %p114 = pneg %p108
      %p115 = scmp.eq.s32.totalorder %s15, 1
      %p116 = por %p114, %p115
      %p117 = scmp.ne.s32.totalorder %s109, %s112
      %p118 = scmp.eq.s32.totalorder %s15, 0
      %p119 = por %p117, %p118
      %p120 = scmp.ne.s32.totalorder %s109, %s112
      %p121 = scmp.eq.s32.totalorder %s20, 1
      %p122 = por %p120, %p121
      %p123 = scmp.ne.s32.totalorder %s112, %s113
      %p124 = scmp.eq.s32.totalorder %s20, 0
      %p125 = por %p123, %p124
      %p126 = scmp.ne.s32.totalorder %s112, %s113
      %p127 = scmp.eq.s32.totalorder %s21, 1
      %p128 = por %p126, %p127
      %p130 = scmp.ne.s32.totalorder %s113, %s129
      %p131 = scmp.eq.s32.totalorder %s21, 0
      %p132 = por %p130, %p131
      %p133 = scmp.le.s32.totalorder 1, %s15
      %p134 = scmp.lt.s32.totalorder %s15, 3
      %p135 = pnand %p133, %p134
      %p136 = pneg %p135
      // Predicated region
      $region9: #{tpu_custom_call.1} parent=5 // pred_check
        _
      $region10: #{tpu_custom_call.1} parent=5 // pred_check_branch
        %138 = sbr.rel (%p135) target = $region12
      $region11: #{tpu_custom_call.1} parent=5 // pred_region
        %s139 = ssub.s32 %s15, 1
        // Predicated region
        $region13: #{tpu_custom_call.1} parent=11 // pred_check
          %p140 = pneg %p76
        $region14: #{tpu_custom_call.1} parent=11 // pred_check_branch
          %142 = sbr.rel (%p140) target = $region16
        $region15: #{tpu_custom_call.1} parent=11 // pred_region
          _
        $region16: #{tpu_custom_call.1} parent=11 // pred_fallthru
          _
        // Predicated region
        $region17: #{tpu_custom_call.1} parent=11 // pred_check
          %p143 = pneg %p97
        $region18: #{tpu_custom_call.1} parent=11 // pred_check_branch
          %145 = sbr.rel (%p143) target = $region20
        $region19: #{tpu_custom_call.1} parent=11 // pred_region
          _
        $region20: #{tpu_custom_call.1} parent=11 // pred_fallthru
          _
      $region12: #{tpu_custom_call.1} parent=5 // pred_fallthru
        _
      %p146 = scmp.lt.s32.totalorder %s15, 2
      // Predicated region
      $region21: #{tpu_custom_call.1} parent=5 // pred_check
        %p147 = pneg %p146
      $region22: #{tpu_custom_call.1} parent=5 // pred_check_branch
        %149 = sbr.rel (%p147) target = $region24
      $region23: #{tpu_custom_call.1} parent=5 // pred_region
        // Predicated region
        $region25: #{tpu_custom_call.1} parent=23 // pred_check
          %p150 = pneg %p49
        $region26: #{tpu_custom_call.1} parent=23 // pred_check_branch
          %152 = sbr.rel (%p150) target = $region28
        $region27: #{tpu_custom_call.1} parent=23 // pred_region
          %s153 = sand.u32 %s39, 1
          %s154 = scalar_lea.sflag [#allocation3], %s153
          %s155 = sand.u32 %s39, 1
          %s156 = smul.addr %s155, 2
          %s157 = scalar_lea.vmem [#allocation2], %s156
          %s159 = ssub.s32 32, 32
          %160 = vsyncadd %s154, %s159
          %s161 = sadd.s32 %s23, %s22
          %s162 = smul.addr %s161, 32
          %s163 = scalar_lea.hbm %s0, %s162
          %s165 = sshll.u32 %s157, 4
          %s166 = int_to_ptr.vmem [resolvable:$true] %s165
          %168 = dma.hbm_to_vmem [thread:$0]  %s163, 32, %s166, %s154
        $region28: #{tpu_custom_call.1} parent=23 // pred_fallthru
          _
      $region24: #{tpu_custom_call.1} parent=5 // pred_fallthru
        _
      %p169 = scmp.le.s32.totalorder 1, %s15
      %p170 = scmp.lt.s32.totalorder %s15, 3
      %p171 = pnand %p169, %p170
      %p172 = pneg %p171
      // Predicated region
      $region29: #{tpu_custom_call.1} parent=5 // pred_check
        _
      $region30: #{tpu_custom_call.1} parent=5 // pred_check_branch
        %174 = sbr.rel (%p171) target = $region32
      $region31: #{tpu_custom_call.1} parent=5 // pred_region
        %s175 = ssub.s32 %s15, 1
        %s176 = sand.u32 %s42, 1
        %s177 = scalar_lea.sflag [#allocation3], %s176
        %s178 = sand.u32 %s42, 1
        %s179 = smul.addr %s178, 2
        %s180 = scalar_lea.vmem [#allocation2], %s179
        // Predicated region
        $region33: #{tpu_custom_call.1} parent=31 // pred_check
          %p181 = pneg %p55
        $region34: #{tpu_custom_call.1} parent=31 // pred_check_branch
          %183 = sbr.rel (%p181) target = $region36
        $region35: #{tpu_custom_call.1} parent=31 // pred_region
          %184 = dma.done %s177, 32
        $region36: #{tpu_custom_call.1} parent=31 // pred_fallthru
          _
        %s185 = sand.u32 %s42, 1
        %s186 = scalar_lea.sflag [#allocation3], %s185
        %s187 = sand.u32 %s42, 1
        %s188 = smul.addr %s187, 2
        %s189 = scalar_lea.vmem [#allocation2], %s188
        %p190 = pneg %p55
        %p191 = pneg %p52
        %p192 = pneg %p76
        %p193 = pneg %p73
        %p194 = pneg %p97
        %p195 = pneg %p94
        %p196 = pneg %p125
        %p197 = pneg %p122
        %s198 = sand.u32 %s112, 1
        %s199 = scalar_lea.sflag [#allocation4], %s198
        %s200 = sand.u32 %s112, 1
        %s201 = smul.addr %s200, 2
        %s202 = scalar_lea.vmem [#allocation5], %s201
        %v203 = vld [vmem:[%s180] sm:$0x3]
        %v204 = vlaneseq
        %v205 = vshrl.u32 %v204, 7
        %v206 = vsub.s32 0, %v205
        %v207 = vrot.slane %v203, %v206
        %v208 = vlaneseq
        %v209 = vshrl.u32 %v208, 7
        %v210 = vsub.s32 1, %v209
        %v211 = vrot.slane %v203, %v210
        %213 = vbcast.lane.b32.xlu0 %v207, 256
        %v214 = vpop.permute.xlu0 %213
        %v216 = vunpack.c.l.s4 1983009808
        %v217 = vunpack.c.0.s8 %v216
        %v218 = vlaneseq
        %v219 = vshrl.u32 %v218, 7
        %v220 = vsub.s32 %v217, %v219
        %v221 = vrot.slane %v214, %v220
        %223 = vbcast.lane.b32.xlu0 %v211, 256
        %v224 = vpop.permute.xlu0 %223
        %v226 = vunpack.c.l.s4 1983009808
        %v227 = vunpack.c.0.s8 %v226
        %v228 = vlaneseq
        %v229 = vshrl.u32 %v228, 7
        %v230 = vsub.s32 %v227, %v229
        %v231 = vrot.slane %v224, %v230
        %v232 = vcombine.low %v221, %v231
        %v233 = vcombine.high %v221, %v231
        %v235 = vunpack.c.l.s4 1934713408
        %v236 = vunpack.c.0.s8 %v235
        %v237 = vlaneseq
        %v238 = vshrl.u32 %v237, 7
        %v239 = vsub.s32 %v236, %v238
        %v240 = vrot.slane %v232, %v239
        %v242 = vunpack.c.l.s4 1934713408
        %v243 = vunpack.c.0.s8 %v242
        %v244 = vlaneseq
        %v245 = vshrl.u32 %v244, 7
        %v246 = vsub.s32 %v243, %v245
        %v247 = vrot.slane %v233, %v246
        %v248 = vcombine.high %v240, 0.0
        %v249 = vcombine.high %v247, 0.0
        %251 = vrot.lane.b32.xlu0 %v248, 32
        %v252 = vpop.permute.xlu0 %251
        %255 = vrot.lane.b32.xlu0 %v247, 64
        %v256 = vpop.permute.xlu0 %255
        %259 = vrot.lane.b32.xlu0 %v249, 96
        %v260 = vpop.permute.xlu0 %259
        %vm262 = vcmask 261120
        %v263 = vsel %vm262, %v240, %v252
        %vm264 = vcmask 523264
        %v265 = vsel %vm264, %v263, %v256
        %vm266 = vcmask 785408
        %v267 = vsel %vm266, %v265, %v260
        %v268 = vld [vmem:[%s1] sm:$0x1]
        %v270 = vlaneseq
        %v271 = vshrl.u32 %v270, 7
        %v272 = vsub.s32 0, %v271
        %v273 = vrot.slane %v268, %v272
        %v275 = vmul.f32 %v267, %v273
        %v276 = vld [vmem:[%s2] sm:$0x1]
        %v278 = vlaneseq
        %v279 = vshrl.u32 %v278, 7
        %v280 = vsub.s32 0, %v279
        %v281 = vrot.slane %v276, %v280
        %v283 = vadd.f32 %v275, %v281
        %v284 = vand.u32 2147483647, %v283
        %vm285 = vcmp.le.f32.partialorder %v284, 0.7853982
        %vm286 = vcmp.lt.s32.totalorder %v283, 0
        %v287 = vand.u32 %v283, 2139095040
        %v288 = vshrl.u32 %v287, 23
        %v289 = vsub.s32 %v288, 127
        %v290 = vand.u32 2147483647, %v283
        %v291 = vand.u32 %v290, 8388607
        %v292 = vor.u32 %v291, 8388608
        %v293 = vsub.s32 0, %v292
        %v294 = vadd.s32 %v289, 1
        %vm295 = vcmp.gt.s32.totalorder %v294, 0
        %v296 = vsel %vm295, %v294, 0
        %v297 = vshrl.u32 %v296, 5
        %v298 = vand.u32 %v296, 31
        %v299 = vsub.s32 32, %v298
        %v300 = vshrl.u32 683565275, %v299
        %v301 = vshll.u32 683565275, %v298
        %v302 = vshrl.u32 2475754826, %v299
        %v303 = vor.u32 %v301, %v302
        %v304 = vshll.u32 2475754826, %v298
        %v305 = vshrl.u32 2131351028, %v299
        %v306 = vor.u32 %v304, %v305
        %v307 = vshll.u32 2131351028, %v298
        %v308 = vshrl.u32 2102212464, %v299
        %v309 = vor.u32 %v307, %v308
        %v310 = vshll.u32 2102212464, %v298
        %v311 = vshrl.u32 920167782, %v299
        %v312 = vor.u32 %v310, %v311
        %v313 = vshll.u32 920167782, %v298
        %v314 = vshrl.u32 1326507024, %v299
        %v315 = vor.u32 %v313, %v314
        %vm316 = vcmp.lt.s32.totalorder %v297, 1
        %vm317 = vcmp.lt.s32.totalorder %v297, 2
        %vm318 = vcmp.lt.s32.totalorder %v297, 3
        %vm319 = vcmp.lt.s32.totalorder %v297, 4
        %v320 = vsel %vm316, %v300, %v303
        %v321 = vsel %vm319, %v309, 2102212464
        %v322 = vsel %vm318, %v306, %v321
        %v323 = vsel %vm317, %v320, %v322
        %v324 = vsel %vm316, %v303, %v306
        %v325 = vsel %vm319, %v312, 920167782
        %v326 = vsel %vm318, %v309, %v325
        %v327 = vsel %vm317, %v324, %v326
        %v328 = vsel %vm316, %v306, %v309
        %v329 = vsel %vm319, %v315, 1326507024
        %v330 = vsel %vm318, %v312, %v329
        %v331 = vsel %vm317, %v328, %v330
        %v332 = vshll.u32 %v292, 8
        %v333 = vmul.u32.u64.compose %v332, %v331
        %v334 = vextract.low.u32 %v333
        %v335 = vextract.high.u32 %v333
        %v336 = vmul.u32.u64.compose %v332, %v327
        %v337 = vextract.low.u32 %v336
        %v338 = vextract.high.u32 %v336
        %v339 = vmul.u32 %v332, %v323
        %v340 = vadd.s32 %v335, %v337
        %vm341 = vc.u32 %v335, %v337
        %v342 = vadd.s32 %v338, 1
        %v343 = vsel %vm341, %v342, %v338
        %v344 = vadd.s32 %v339, %v343
        %v345 = vadd.s32 %v344, 536870912
        %v346 = vshrl.u32 %v345, 30
        %v347 = vshll.u32 %v346, 30
        %v348 = vsub.s32 %v344, %v347
        %vm349 = vcmp.lt.s32.totalorder %v348, 0
        %v350 = vsub.s32 0, %v348
        %v351 = vsel %vm349, %v350, %v348
        %v352 = vclz %v351
        %v353 = vsub.s32 %v352, 2
        %vm354 = vcmp.gt.s32.totalorder 0, %v353
        %v355 = vsel %vm354, 0, %v353
        %v356 = vsub.s32 32, %v355
        %v357 = vshll.u32 %v348, %v355
        %v358 = vshrl.u32 %v340, %v356
        %v359 = vor.u32 %v357, %v358
        %v360 = vsub.s32 4294967266, %v355
        %v361 = vadd.s32 %v360, 127
        %v362 = vshll.u32 %v361, 23
        %v363 = vor.u32 4788187, %v362
        %v364 = vand.u32 2147483647, %v363
        %v366 = vcvt.s32.f32 %v359
        %v367 = vmul.f32 %v366, %v364
        %v368 = vxor.u32 %v367, 2147483648
        %v369 = vsel %vm286, %v368, %v367
        %v370 = vsub.s32 4, %v346
        %v371 = vsel %vm286, %v370, %v346
        %v372 = vsel %vm285, %v283, %v369
        %v373 = vsel %vm285, 0, %v371
        %v374 = vcosq.f32.pop %v372
        %v375 = vsinq.f32.pop %v372
        %vm376 = vweird.f32 %v283
        %v377 = vadd.s32 %v373, 3
        %v378 = vand.u32 %v377, 3
        %vm379 = vcmp.lt.s32.totalorder %v378, 2
        %vm380 = vcmp.eq.s32.totalorder %v378, 0
        %v381 = vxor.u32 %v375, 2147483648
        %v382 = vsel %vm380, %v374, %v381
        %vm383 = vcmp.eq.s32.totalorder %v378, 2
        %v384 = vxor.u32 %v374, 2147483648
        %v385 = vsel %vm383, %v384, %v375
        %v386 = vsel %vm379, %v382, %v385
        %v387 = vsel %vm376, nan, %v386
        %388 = vst [vmem:[%s202] sm:$0x3] %v387
        %s389 = sand.u32 %s112, 1
        %s390 = scalar_lea.sflag [#allocation4], %s389
        %s391 = sand.u32 %s112, 1
        %s392 = smul.addr %s391, 2
        %s393 = scalar_lea.vmem [#allocation5], %s392
        // Predicated region
        $region37: #{tpu_custom_call.1} parent=31 // pred_check
          %p394 = pneg %p122
        $region38: #{tpu_custom_call.1} parent=31 // pred_check_branch
          %396 = sbr.rel (%p394) target = $region40
        $region39: #{tpu_custom_call.1} parent=31 // pred_region
          %s398 = ssub.s32 32, 32
          %399 = vsyncadd %s390, %s398
          %s400 = sadd.s32 %s25, %s24
          %s401 = smul.addr %s400, 32
          %s402 = scalar_lea.hbm %s3, %s401
          %s404 = sshll.u32 %s393, 4
          %s405 = int_to_ptr.vmem [resolvable:$true] %s404
          %407 = dma.vmem_to_hbm [thread:$0]  %s405, 32, %s402, %s390
        $region40: #{tpu_custom_call.1} parent=31 // pred_fallthru
          _
      $region32: #{tpu_custom_call.1} parent=5 // pred_fallthru
        _
      %p408 = scmp.le.s32.totalorder 2, %s15
      // Predicated region
      $region41: #{tpu_custom_call.1} parent=5 // pred_check
        %p409 = pneg %p408
      $region42: #{tpu_custom_call.1} parent=5 // pred_check_branch
        %411 = sbr.rel (%p409) target = $region44
      $region43: #{tpu_custom_call.1} parent=5 // pred_region
        %s412 = ssub.s32 %s15, 2
        // Predicated region
        $region45: #{tpu_custom_call.1} parent=43 // pred_check
          %p413 = pneg %p128
        $region46: #{tpu_custom_call.1} parent=43 // pred_check_branch
          %415 = sbr.rel (%p413) target = $region48
        $region47: #{tpu_custom_call.1} parent=43 // pred_region
          %s416 = sand.u32 %s113, 1
          %s417 = scalar_lea.sflag [#allocation4], %s416
          %s418 = sand.u32 %s113, 1
          %s419 = smul.addr %s418, 2
          %s420 = scalar_lea.vmem [#allocation5], %s419
          %421 = dma.done %s417, 32
        $region48: #{tpu_custom_call.1} parent=43 // pred_fallthru
          _
      $region44: #{tpu_custom_call.1} parent=5 // pred_fallthru
        _
    $region6: #{tpu_custom_call.1} parent=1 // loop_footer
      %s19 = sadd.s32 1, %s15
    $region7: #{tpu_custom_call.1} parent=1 // loop_footer_branch
      %14 = sbr.rel target = $region3
    $region8: #{tpu_custom_call.1} parent=1 // loop_exit
      _
    %422 = vsyncpa [#allocation3], 1
    %s423 = scalar_lea.sflag [#allocation3], 1
    %424 = vsyncpa %s423, 1
    %425 = vsyncpa [#allocation4], 1
    %s426 = scalar_lea.sflag [#allocation4], 1
    %427 = vsyncpa %s426, 1

</llo_original>
